<compile_context>
chip_gen: v6e
topology: v6e:2x2x1
jax: 0.10.0
libtpu: 0.0.40
codegen_flags: <defaults>
</compile_context>

<pallas_src>
import functools

import jax
import jax.numpy as jnp
from jax import lax
from jax.experimental import pallas as pl
from jax.experimental.pallas import tpu as pltpu


def _round_up(x, m):
    return ((x + m - 1) // m) * m


def _vmem_capacity_bytes(default=64 * 1024 * 1024):
    """Per-core VMEM capacity, with a conservative fallback (v7x size)."""
    try:
        info_fn = getattr(pltpu, "get_tpu_info", None)
        if info_fn is None:
            return default
        return int(getattr(info_fn(), "vmem_capacity_bytes", default))
    except Exception:
        return default


def _conv_zeros_kernel(x_ref, w_ref, b_ref, o_ref, y_ref, acc_ref, *,
                       K, Wp, S_out, cout_pad):
    """One (batch, cin-chunk) grid step.

    x_ref : (1, CK, Sp)            flattened zero-padded image (this chunk)
    w_ref : (K*K*cout_pad, CK)     tap-major scale-folded weights (this chunk)
    b_ref : (cout_pad, 1)          scale-folded bias
    o_ref : (1, cout_pad, S_out)   lane-dense NCHW-flattened output
    y_ref : (K*K*cout_pad, Sp)     f32 scratch: un-shifted per-tap matmul rows
    acc_ref:(cout_pad, S_out)      f32 scratch: accumulator over taps & chunks
    """
    c = pl.program_id(1)

    @pl.when(c == 0)
    def _init():
        acc_ref[...] = jnp.zeros_like(acc_ref)

    # One wide MXU pass: rows enumerate (tap, cout), contraction is this Cin
    # chunk, lanes are the aligned (un-shifted) flattened image.
    y_ref[...] = jnp.dot(w_ref[...], x_ref[0],
                         preferred_element_type=jnp.float32)

    # Apply the tap shifts on the small result: static lane-offset reads from
    # VMEM accumulated in f32 (d = kh*Wp + kw is a Python constant here).
    for kh in range(K):
        for kw in range(K):
            t = kh * K + kw
            d = kh * Wp + kw
            acc_ref[...] += y_ref[t * cout_pad:(t + 1) * cout_pad, d:d + S_out]

    @pl.when(c == pl.num_programs(1) - 1)
    def _finalize():
        o_ref[0] = (acc_ref[...] + b_ref[...]).astype(o_ref.dtype)


def conv2d_zeros_forward(x_nchw, weight, bias, logs, *, padding, log_scale=3.0,
                         compute_dtype=jnp.bfloat16):
    """Forward pass of Conv2dZeros.

    Args:
      x_nchw:  (B, Cin, H, W)          -- PyTorch NCHW convention.
      weight:  (Cout, Cin, K, K)       -- PyTorch conv weight layout.
      bias:    (Cout,).
      logs:    (Cout, 1, 1).
      compute_dtype: dtype of MXU operands (accumulation is always f32).
    Returns:
      (B, Cout, Ho, Wo) in x's dtype, NCHW.
    """
    B, Cin, H, W = x_nchw.shape
    Cout, Cin_w, KH, KW = weight.shape
    assert Cin == Cin_w and KH == KW, "square kernels only"
    K = KH

    Hp, Wp = H + 2 * padding, W + 2 * padding
    Ho, Wo = Hp - K + 1, Wp - K + 1
    assert Ho > 0 and Wo > 0

    out_dtype = x_nchw.dtype
    in_dtype = jnp.dtype(compute_dtype) if compute_dtype is not None else x_nchw.dtype

    # ---- channel padding / Cin chunking (contraction tiling) ----
    cout_pad = _round_up(Cout, 8)
    cin8 = _round_up(Cin, 8)
    if cin8 <= 512:
        cin_pad, ck = cin8, cin8              # single chunk (block = full dim)
    else:
        ck = 256                              # multiple of 128: valid lane block
        cin_pad = _round_up(Cin, ck)
    n_chunks = cin_pad // ck

    # ---- flattened-spatial geometry ----
    d_max = (K - 1) * Wp + (K - 1)            # largest tap shift in flat lanes
    S_out = _round_up(Ho * Wp, 128)           # "wide" rows: Wp cols/row, K-1 junk
    Sp = _round_up(S_out + d_max, 128)        # input lanes (>= Hp*Wp), zero tail
    kkc = K * K * cout_pad

    # ---- fold exp(logs*log_scale) into weight & bias (conv is linear) ----
    scale = jnp.exp(logs.reshape(Cout).astype(jnp.float32) * log_scale)
    w_sc = weight.astype(jnp.float32) * scale[:, None, None, None]
    w_taps = jnp.transpose(w_sc, (2, 3, 0, 1)).reshape(K * K, Cout, Cin)
    w_big = jnp.zeros((K * K, cout_pad, cin_pad), jnp.float32)
    w_big = w_big.at[:, :Cout, :Cin].set(w_taps)
    w_big = w_big.reshape(kkc, cin_pad).astype(in_dtype)
    b2 = jnp.zeros((cout_pad, 1), jnp.float32).at[:Cout, 0].set(
        bias.astype(jnp.float32) * scale)

    # ---- pad spatially, flatten (free in NCHW), pad channels & lanes ----
    xp = jnp.pad(x_nchw, ((0, 0), (0, 0), (padding, padding), (padding, padding)))
    xf = xp.reshape(B, Cin, Hp * Wp).astype(in_dtype)
    xf = jnp.pad(xf, ((0, 0), (0, cin_pad - Cin), (0, Sp - Hp * Wp)))

    kernel = functools.partial(_conv_zeros_kernel, K=K, Wp=Wp, S_out=S_out,
                               cout_pad=cout_pad)

    # ---- VMEM budget from the real buffer sizes & cost estimate ----
    isz = jnp.dtype(in_dtype).itemsize
    osz = jnp.dtype(out_dtype).itemsize
    need = (2 * ck * Sp * isz                 # double-buffered input block
            + 2 * cout_pad * S_out * osz      # double-buffered output block
            + 2 * kkc * ck * isz              # weights (constant index map)
            + 2 * cout_pad * 128 * 4          # bias (tile-padded)
            + kkc * Sp * 4                    # y scratch
            + cout_pad * S_out * 4)           # accumulator scratch
    vmem_cap = _vmem_capacity_bytes()
    vmem_limit = int(min(max(int(1.25 * need) + (4 << 20), 32 << 20),
                         int(0.75 * vmem_cap)))

    cost = pl.CostEstimate(
        flops=int(2 * B * kkc * cin_pad * Sp),
        transcendentals=0,
        bytes_accessed=int(xf.size * isz + B * w_big.size * isz
                           + b2.size * 4 + B * cout_pad * S_out * osz))

    out = pl.pallas_call(
        kernel,
        out_shape=jax.ShapeDtypeStruct((B, cout_pad, S_out), out_dtype),
        grid_spec=pltpu.PrefetchScalarGridSpec(
            num_scalar_prefetch=0,
            grid=(B, n_chunks),               # reduction axis innermost
            in_specs=[
                pl.BlockSpec((1, ck, Sp), lambda b, c: (b, c, 0)),
                pl.BlockSpec((kkc, ck), lambda b, c: (0, c)),
                pl.BlockSpec((cout_pad, 1), lambda b, c: (0, 0)),
            ],
            out_specs=pl.BlockSpec((1, cout_pad, S_out), lambda b, c: (b, 0, 0)),
            scratch_shapes=[
                pltpu.VMEM((kkc, Sp), jnp.float32),
                pltpu.VMEM((cout_pad, S_out), jnp.float32),
            ]),
        compiler_params=pltpu.CompilerParams(
            # Batch axis is megacore-shardable on v7x; the Cin-chunk axis is a
            # reduction carried in VMEM scratch -> "arbitrary".
            dimension_semantics=("parallel", "arbitrary"),
            vmem_limit_bytes=vmem_limit),
        cost_estimate=cost,
    )(xf, w_big, b2)

    # Drop channel padding, the lane-pad tail, and the K-1 junk columns per
    # wide row; the result is already NCHW.
    y = out[:, :Cout, :Ho * Wp].reshape(B, Cout, Ho, Wp)[:, :, :, :Wo]
    return y


def _reference_forward(x_nchw, weight, bias, logs, *, padding, log_scale=3.0):
    """Pure-JAX reference (lax conv) for correctness checking."""
    y = lax.conv_general_dilated(
        x_nchw, weight, window_strides=(1, 1),
        padding=[(padding, padding), (padding, padding)],
        dimension_numbers=("NCHW", "OIHW", "NCHW"),
        precision=lax.Precision.HIGHEST)
    y = y + bias.reshape(1, -1, 1, 1)
    return y * jnp.exp(logs.reshape(1, -1, 1, 1) * log_scale)


if __name__ == "__main__":
    B, Cin, Cout, H, W = 2, 4, 4, 16, 16
    K, padding, log_scale = 3, 1, 3.0

    key = jax.random.PRNGKey(0)
    x = jax.random.normal(key, (B, Cin, H, W), dtype=jnp.float32)

    # Module __init__ semantics: weight, bias, logs are all zero-initialized.
    weight0 = jnp.zeros((Cout, Cin, K, K), jnp.float32)
    bias0 = jnp.zeros((Cout,), jnp.float32)
    logs0 = jnp.zeros((Cout, 1, 1), jnp.float32)

    fwd32 = functools.partial(conv2d_zeros_forward, padding=padding,
                              log_scale=log_scale, compute_dtype=jnp.float32)
    fwd_bf16 = functools.partial(conv2d_zeros_forward, padding=padding,
                                 log_scale=log_scale)   # default: bf16 operands
    ref = functools.partial(_reference_forward, padding=padding, log_scale=log_scale)

    # Zero-init path (module defaults): output must be exactly zero.
    y0 = jax.block_until_ready(fwd32(x, weight0, bias0, logs0))
    assert y0.shape == (B, Cout, H, W)
    assert jnp.allclose(y0, ref(x, weight0, bias0, logs0), atol=1e-5), "zero-init mismatch"

    # Non-trivial parameters: exact-f32 operand path against the lax.conv reference.
    k1, k2, k3 = jax.random.split(jax.random.PRNGKey(1), 3)
    weight1 = 0.1 * jax.random.normal(k1, (Cout, Cin, K, K), dtype=jnp.float32)
    bias1 = 0.1 * jax.random.normal(k2, (Cout,), dtype=jnp.float32)
    logs1 = 0.1 * jax.random.normal(k3, (Cout, 1, 1), dtype=jnp.float32)
    y1 = jax.block_until_ready(fwd32(x, weight1, bias1, logs1))
    assert jnp.allclose(y1, ref(x, weight1, bias1, logs1), atol=2e-4), "f32 conv mismatch"

    # Default path (bf16 MXU operands, f32 accumulation) -- looser tolerance.
    y2 = jax.block_until_ready(fwd_bf16(x, weight1, bias1, logs1))
    assert y2.shape == (B, Cout, H, W)
    assert jnp.allclose(y2, ref(x, weight1, bias1, logs1), atol=5e-2, rtol=5e-2), \
        "bf16 conv mismatch"

    print("KERNEL_OK")
</pallas_src>

<mosaic_0001>
module attributes {stable_mosaic.version = 11 : i64} {
  func.func @_conv_zeros_kernel(%arg0: i32, %arg1: i32, %arg2: memref<1x8x512xf32, #tpu.memory_space<vmem>>, %arg3: memref<72x8xf32, #tpu.memory_space<vmem>>, %arg4: memref<8x1xf32, #tpu.memory_space<vmem>>, %arg5: memref<1x8x384xf32, #tpu.memory_space<vmem>>, %arg6: memref<72x512xf32, #tpu.memory_space<vmem>>, %arg7: memref<8x384xf32, #tpu.memory_space<vmem>>) attributes {dimension_semantics = [#tpu.dimension_semantics<parallel>, #tpu.dimension_semantics<arbitrary>], iteration_bounds = array<i64: 2, 1>, scalar_prefetch = 0 : i64, scratch_operands = 2 : i64, tpu.core_type = #tpu.core_type<tc>, window_params = [{transform_indices = @transform_0, window_bounds = array<i64: 1, 8, 512>}, {transform_indices = @transform_1, window_bounds = array<i64: 72, 8>}, {pipeline_mode = #tpu.pipeline_mode<synchronous>, transform_indices = @transform_2, window_bounds = array<i64: 8, 1>}, {transform_indices = @transform_3, window_bounds = array<i64: 1, 8, 384>}]} {
    %c0_i32 = arith.constant 0 : i32
    %0 = arith.cmpi eq, %arg1, %c0_i32 : i32
    %1 = arith.extui %0 : i1 to i32
    %c0_i32_0 = arith.constant 0 : i32
    %2 = arith.cmpi ne, %1, %c0_i32_0 : i32
    scf.if %2 {
      %cst_47 = arith.constant 0.000000e+00 : f32
      %47 = vector.broadcast %cst_47 : f32 to vector<8x384xf32>
      %c0_48 = arith.constant 0 : index
      %c0_49 = arith.constant 0 : index
      %48 = vector.load %arg7[%c0_48, %c0_49] : memref<8x384xf32, #tpu.memory_space<vmem>>, vector<8x384xf32>
      tpu.vector_store %arg7[%c0_48, %c0_49], %47 {strides = array<i32>} : memref<8x384xf32, #tpu.memory_space<vmem>>, vector<8x384xf32>,
    } else {
    }
    %c0 = arith.constant 0 : index
    %c0_1 = arith.constant 0 : index
    %3 = vector.load %arg3[%c0, %c0_1] : memref<72x8xf32, #tpu.memory_space<vmem>>, vector<72x8xf32>
    %c0_2 = arith.constant 0 : index
    %c0_3 = arith.constant 0 : index
    %c0_4 = arith.constant 0 : index
    %4 = vector.load %arg2[%c0_2, %c0_3, %c0_4] : memref<1x8x512xf32, #tpu.memory_space<vmem>>, vector<1x8x512xf32>
    %5 = vector.shape_cast %4 : vector<1x8x512xf32> to vector<8x512xf32>
    %cst = arith.constant dense<0.000000e+00> : vector<72x512xf32>
    %6 = tpu.matmul %3, %5, %cst {dimension_numbers = #tpu.dot_dimension_numbers<[1], [0], [0], [1], [0, 0, 1, 1], [], []>} : vector<72x8xf32>, vector<8x512xf32>, vector<72x512xf32> -> vector<72x512xf32>
    %c0_5 = arith.constant 0 : index
    %c0_6 = arith.constant 0 : index
    %7 = vector.load %arg6[%c0_5, %c0_6] : memref<72x512xf32, #tpu.memory_space<vmem>>, vector<72x512xf32>
    tpu.vector_store %arg6[%c0_5, %c0_6], %6 {strides = array<i32>} : memref<72x512xf32, #tpu.memory_space<vmem>>, vector<72x512xf32>,
    %c0_7 = arith.constant 0 : index
    %c0_8 = arith.constant 0 : index
    %8 = vector.load %arg7[%c0_7, %c0_8] : memref<8x384xf32, #tpu.memory_space<vmem>>, vector<8x384xf32>
    %c0_9 = arith.constant 0 : index
    %c0_10 = arith.constant 0 : index
    %9 = vector.load %arg6[%c0_9, %c0_10] : memref<72x512xf32, #tpu.memory_space<vmem>>, vector<8x384xf32>
    %10 = arith.addf %8, %9 : vector<8x384xf32>
    %c0_11 = arith.constant 0 : index
    %c0_12 = arith.constant 0 : index
    %11 = vector.load %arg7[%c0_11, %c0_12] : memref<8x384xf32, #tpu.memory_space<vmem>>, vector<8x384xf32>
    tpu.vector_store %arg7[%c0_11, %c0_12], %10 {strides = array<i32>} : memref<8x384xf32, #tpu.memory_space<vmem>>, vector<8x384xf32>,
    %c0_13 = arith.constant 0 : index
    %c0_14 = arith.constant 0 : index
    %12 = vector.load %arg7[%c0_13, %c0_14] : memref<8x384xf32, #tpu.memory_space<vmem>>, vector<8x384xf32>
    %c8 = arith.constant 8 : index
    %c1 = arith.constant 1 : index
    %13 = vector.load %arg6[%c8, %c1] : memref<72x512xf32, #tpu.memory_space<vmem>>, vector<8x384xf32>
    %14 = arith.addf %12, %13 : vector<8x384xf32>
    %c0_15 = arith.constant 0 : index
    %c0_16 = arith.constant 0 : index
    %15 = vector.load %arg7[%c0_15, %c0_16] : memref<8x384xf32, #tpu.memory_space<vmem>>, vector<8x384xf32>
    tpu.vector_store %arg7[%c0_15, %c0_16], %14 {strides = array<i32>} : memref<8x384xf32, #tpu.memory_space<vmem>>, vector<8x384xf32>,
    %c0_17 = arith.constant 0 : index
    %c0_18 = arith.constant 0 : index
    %16 = vector.load %arg7[%c0_17, %c0_18] : memref<8x384xf32, #tpu.memory_space<vmem>>, vector<8x384xf32>
    %c16 = arith.constant 16 : index
    %c2 = arith.constant 2 : index
    %17 = vector.load %arg6[%c16, %c2] : memref<72x512xf32, #tpu.memory_space<vmem>>, vector<8x384xf32>
    %18 = arith.addf %16, %17 : vector<8x384xf32>
    %c0_19 = arith.constant 0 : index
    %c0_20 = arith.constant 0 : index
    %19 = vector.load %arg7[%c0_19, %c0_20] : memref<8x384xf32, #tpu.memory_space<vmem>>, vector<8x384xf32>
    tpu.vector_store %arg7[%c0_19, %c0_20], %18 {strides = array<i32>} : memref<8x384xf32, #tpu.memory_space<vmem>>, vector<8x384xf32>,
    %c0_21 = arith.constant 0 : index
    %c0_22 = arith.constant 0 : index
    %20 = vector.load %arg7[%c0_21, %c0_22] : memref<8x384xf32, #tpu.memory_space<vmem>>, vector<8x384xf32>
    %c24 = arith.constant 24 : index
    %c18 = arith.constant 18 : index
    %21 = vector.load %arg6[%c24, %c18] : memref<72x512xf32, #tpu.memory_space<vmem>>, vector<8x384xf32>
    %22 = arith.addf %20, %21 : vector<8x384xf32>
    %c0_23 = arith.constant 0 : index
    %c0_24 = arith.constant 0 : index
    %23 = vector.load %arg7[%c0_23, %c0_24] : memref<8x384xf32, #tpu.memory_space<vmem>>, vector<8x384xf32>
    tpu.vector_store %arg7[%c0_23, %c0_24], %22 {strides = array<i32>} : memref<8x384xf32, #tpu.memory_space<vmem>>, vector<8x384xf32>,
    %c0_25 = arith.constant 0 : index
    %c0_26 = arith.constant 0 : index
    %24 = vector.load %arg7[%c0_25, %c0_26] : memref<8x384xf32, #tpu.memory_space<vmem>>, vector<8x384xf32>
    %c32 = arith.constant 32 : index
    %c19 = arith.constant 19 : index
    %25 = vector.load %arg6[%c32, %c19] : memref<72x512xf32, #tpu.memory_space<vmem>>, vector<8x384xf32>
    %26 = arith.addf %24, %25 : vector<8x384xf32>
    %c0_27 = arith.constant 0 : index
    %c0_28 = arith.constant 0 : index
    %27 = vector.load %arg7[%c0_27, %c0_28] : memref<8x384xf32, #tpu.memory_space<vmem>>, vector<8x384xf32>
    tpu.vector_store %arg7[%c0_27, %c0_28], %26 {strides = array<i32>} : memref<8x384xf32, #tpu.memory_space<vmem>>, vector<8x384xf32>,
    %c0_29 = arith.constant 0 : index
    %c0_30 = arith.constant 0 : index
    %28 = vector.load %arg7[%c0_29, %c0_30] : memref<8x384xf32, #tpu.memory_space<vmem>>, vector<8x384xf32>
    %c40 = arith.constant 40 : index
    %c20 = arith.constant 20 : index
    %29 = vector.load %arg6[%c40, %c20] : memref<72x512xf32, #tpu.memory_space<vmem>>, vector<8x384xf32>
    %30 = arith.addf %28, %29 : vector<8x384xf32>
    %c0_31 = arith.constant 0 : index
    %c0_32 = arith.constant 0 : index
    %31 = vector.load %arg7[%c0_31, %c0_32] : memref<8x384xf32, #tpu.memory_space<vmem>>, vector<8x384xf32>
    tpu.vector_store %arg7[%c0_31, %c0_32], %30 {strides = array<i32>} : memref<8x384xf32, #tpu.memory_space<vmem>>, vector<8x384xf32>,
    %c0_33 = arith.constant 0 : index
    %c0_34 = arith.constant 0 : index
    %32 = vector.load %arg7[%c0_33, %c0_34] : memref<8x384xf32, #tpu.memory_space<vmem>>, vector<8x384xf32>
    %c48 = arith.constant 48 : index
    %c36 = arith.constant 36 : index
    %33 = vector.load %arg6[%c48, %c36] : memref<72x512xf32, #tpu.memory_space<vmem>>, vector<8x384xf32>
    %34 = arith.addf %32, %33 : vector<8x384xf32>
    %c0_35 = arith.constant 0 : index
    %c0_36 = arith.constant 0 : index
    %35 = vector.load %arg7[%c0_35, %c0_36] : memref<8x384xf32, #tpu.memory_space<vmem>>, vector<8x384xf32>
    tpu.vector_store %arg7[%c0_35, %c0_36], %34 {strides = array<i32>} : memref<8x384xf32, #tpu.memory_space<vmem>>, vector<8x384xf32>,
    %c0_37 = arith.constant 0 : index
    %c0_38 = arith.constant 0 : index
    %36 = vector.load %arg7[%c0_37, %c0_38] : memref<8x384xf32, #tpu.memory_space<vmem>>, vector<8x384xf32>
    %c56 = arith.constant 56 : index
    %c37 = arith.constant 37 : index
    %37 = vector.load %arg6[%c56, %c37] : memref<72x512xf32, #tpu.memory_space<vmem>>, vector<8x384xf32>
    %38 = arith.addf %36, %37 : vector<8x384xf32>
    %c0_39 = arith.constant 0 : index
    %c0_40 = arith.constant 0 : index
    %39 = vector.load %arg7[%c0_39, %c0_40] : memref<8x384xf32, #tpu.memory_space<vmem>>, vector<8x384xf32>
    tpu.vector_store %arg7[%c0_39, %c0_40], %38 {strides = array<i32>} : memref<8x384xf32, #tpu.memory_space<vmem>>, vector<8x384xf32>,
    %c0_41 = arith.constant 0 : index
    %c0_42 = arith.constant 0 : index
    %40 = vector.load %arg7[%c0_41, %c0_42] : memref<8x384xf32, #tpu.memory_space<vmem>>, vector<8x384xf32>
    %c64 = arith.constant 64 : index
    %c38 = arith.constant 38 : index
    %41 = vector.load %arg6[%c64, %c38] : memref<72x512xf32, #tpu.memory_space<vmem>>, vector<8x384xf32>
    %42 = arith.addf %40, %41 : vector<8x384xf32>
    %c0_43 = arith.constant 0 : index
    %c0_44 = arith.constant 0 : index
    %43 = vector.load %arg7[%c0_43, %c0_44] : memref<8x384xf32, #tpu.memory_space<vmem>>, vector<8x384xf32>
    tpu.vector_store %arg7[%c0_43, %c0_44], %42 {strides = array<i32>} : memref<8x384xf32, #tpu.memory_space<vmem>>, vector<8x384xf32>,
    %c0_i32_45 = arith.constant 0 : i32
    %44 = arith.cmpi eq, %arg1, %c0_i32_45 : i32
    %45 = arith.extui %44 : i1 to i32
    %c0_i32_46 = arith.constant 0 : i32
    %46 = arith.cmpi ne, %45, %c0_i32_46 : i32
    scf.if %46 {
      %c0_47 = arith.constant 0 : index
      %c0_48 = arith.constant 0 : index
      %47 = vector.load %arg7[%c0_47, %c0_48] : memref<8x384xf32, #tpu.memory_space<vmem>>, vector<8x384xf32>
      %c0_49 = arith.constant 0 : index
      %c0_50 = arith.constant 0 : index
      %48 = vector.load %arg4[%c0_49, %c0_50] : memref<8x1xf32, #tpu.memory_space<vmem>>, vector<8x1xf32>
      %49 = vector.broadcast %48 : vector<8x1xf32> to vector<8x384xf32>
      %50 = arith.addf %47, %49 : vector<8x384xf32>
      %c0_51 = arith.constant 0 : index
      %c0_52 = arith.constant 0 : index
      %c0_53 = arith.constant 0 : index
      %51 = vector.load %arg5[%c0_51, %c0_52, %c0_53] : memref<1x8x384xf32, #tpu.memory_space<vmem>>, vector<1x8x384xf32>
      %52 = vector.shape_cast %51 : vector<1x8x384xf32> to vector<8x384xf32>
      %53 = vector.shape_cast %50 : vector<8x384xf32> to vector<1x8x384xf32>
      tpu.vector_store %arg5[%c0_51, %c0_52, %c0_53], %53 {strides = array<i32>} : memref<1x8x384xf32, #tpu.memory_space<vmem>>, vector<1x8x384xf32>,
    } else {
    }
    return
  }
  func.func @transform_0(%arg0: i32, %arg1: i32) -> (i32, i32, i32) {
    %c0_i32 = arith.constant 0 : i32
    %c0_i32_0 = arith.constant 0 : i32
    return %arg0, %arg1, %c0_i32 : i32, i32, i32
  }
  func.func @transform_1(%arg0: i32, %arg1: i32) -> (i32, i32) {
    %c0_i32 = arith.constant 0 : i32
    %c0_i32_0 = arith.constant 0 : i32
    return %c0_i32, %arg1 : i32, i32
  }
  func.func @transform_2(%arg0: i32, %arg1: i32) -> (i32, i32) {
    %c0_i32 = arith.constant 0 : i32
    %c0_i32_0 = arith.constant 0 : i32
    %c0_i32_1 = arith.constant 0 : i32
    return %c0_i32, %c0_i32_0 : i32, i32
  }
  func.func @transform_3(%arg0: i32, %arg1: i32) -> (i32, i32, i32) {
    %c0_i32 = arith.constant 0 : i32
    %c0_i32_0 = arith.constant 0 : i32
    %c0_i32_1 = arith.constant 0 : i32
    return %arg0, %c0_i32, %c0_i32_0 : i32, i32, i32
  }
}

</mosaic_0001>

<llo_original>
// kernel: tpu_custom_call.1
$region0: #{tpu_custom_call.1}
  #allocation0 [shape = 'u32[]', space=smem, size = 0x4, offset = 0x4, fixed_abs, tag = 'smem constant byte address 0x4 - core index']
  #allocation1 [shape = 'u32[144,128]{1,0:T(1,128)}', space=vmem, size = 0x12000, scoped, tag = 'internal scratch']
  #allocation2 [shape = 'f32[72,512]{1,0:T(8,128)}', space=vmem, size = 0x24000, scoped, tag = 'scratch operand']
  #allocation3 [shape = 'f32[8,384]{1,0:T(8,128)}', space=vmem, size = 0x3000, scoped, tag = 'scratch operand']
  %s0 = inlined_call_operand.vmem [shape: f32[2,8,512], index: 0, kind: input, shape index: {}]
  %s1 = inlined_call_operand.vmem [shape: f32[72,8], index: 1, kind: input, shape index: {}]
  %s2 = inlined_call_operand.vmem [shape: f32[8,1], index: 2, kind: input, shape index: {}]
  %s3 = inlined_call_operand.hbm [shape: f32[2,8,384], index: 3, kind: output, shape index: {}]
  %s4 = sld [smem:[#allocation0]]
  $region53: #{tpu_custom_call.1} parent=0
    _
  %s6 = ssub.s32 1, %s4
  %s7 = scalar_select 0, %s6, %s4
  $region1: #{tpu_custom_call.1} parent=0
    #allocation4 [shape = 'u8[24576]{0}', space=vmem, size = 0x6000, scoped, tag = 'output window, operand 0']
    #allocation5 [shape = 's32[2]{0}', space=sflag, size = 0x8, scoped, tag = 'scoped memory for tpu_custom_call.1']
    %8 = vsyncpa [#allocation5], 0
    %s9 = scalar_lea.sflag [#allocation5], 1
    %10 = vsyncpa %s9, 0
    loop: start=0, step=1, limit=4
    $region2: #{tpu_custom_call.1} parent=1 // loop_pre_header
      _
    $region3: #{tpu_custom_call.1} parent=1 // loop_header
      %s12 = sphi 0, %s16
      %p13 = scmp.ge.s32.totalorder %s12, 4
      %s19 = sphi 0, %s31
      %s20 = sphi 0, %s27
      %s21 = sphi 0, %s19
      %s22 = sphi 0, %s20
      %s23 = sphi 0, %s21
      %s24 = sphi 0, %s22
      %s36 = sphi 0, %s38
      %s39 = sphi 0, %s36
      %s40 = sphi 0, %s39
      %s56 = sphi 0, %s40
      %s62 = sphi 0, %s64
      %s65 = sphi 0, %s62
      %s66 = sphi 0, %s65
      %s82 = sphi 0, %s66
      %s86 = sphi 0, %s86
      %s88 = sphi 0, %s86
      %s89 = sphi 0, %s88
      %s103 = sphi 0, %s89
      %s109 = sphi 0, %s111
      %s112 = sphi 0, %s109
      %s113 = sphi 0, %s112
      %s129 = sphi 0, %s113
    $region4: #{tpu_custom_call.1} parent=1 // loop_header_branch
      %15 = sbr.rel (%p13) target = $region8
    $region5: #{tpu_custom_call.1} parent=1 // loop_body
      %s17 = ssub.s32 %s12, 1
      %s18 = ssub.s32 %s12, 2
      %s25 = sadd.s32 1, %s20
      %p26 = scmp.ge.s32.totalorder %s25, 1
      %s27 = scalar_select %p26, 0, %s25
      %s28 = sadd.s32 1, %s19
      %s29 = scalar_select %p26, %s28, %s19
      %p30 = scmp.ge.s32.totalorder %s29, 2
      %s31 = scalar_select %p30, 0, %s29
      %s32 = ssub.s32 %s19, %s31
      %s33 = ssub.s32 %s20, %s27
      %s34 = sor.u32 %s32, %s33
      %p35 = scmp.eq.s32.totalorder %s34, 0
      %s37 = sadd.s32 %s36, 1
      %s38 = scalar_select %p35, %s36, %s37
      %p41 = pneg %p35
      %p42 = scmp.eq.s32.totalorder %s12, 1
      %p43 = por %p41, %p42
      %p44 = scmp.ne.s32.totalorder %s36, %s39
      %p45 = scmp.eq.s32.totalorder %s12, 0
      %p46 = por %p44, %p45
      %p47 = scmp.ne.s32.totalorder %s36, %s39
      %p48 = scmp.eq.s32.totalorder %s17, 1
      %p49 = por %p47, %p48
      %p50 = scmp.ne.s32.totalorder %s39, %s40
      %p51 = scmp.eq.s32.totalorder %s17, 0
      %p52 = por %p50, %p51
      %p53 = scmp.ne.s32.totalorder %s39, %s40
      %p54 = scmp.eq.s32.totalorder %s18, 1
      %p55 = por %p53, %p54
      %p57 = scmp.ne.s32.totalorder %s40, %s56
      %p58 = scmp.eq.s32.totalorder %s18, 0
      %p59 = por %p57, %p58
      %s60 = ssub.s32 %s20, %s27
      %p61 = scmp.eq.s32.totalorder %s60, 0
      %s63 = sadd.s32 %s62, 1
      %s64 = scalar_select %p61, %s62, %s63
      %p67 = pneg %p61
      %p68 = scmp.eq.s32.totalorder %s12, 1
      %p69 = por %p67, %p68
      %p70 = scmp.ne.s32.totalorder %s62, %s65
      %p71 = scmp.eq.s32.totalorder %s12, 0
      %p72 = por %p70, %p71
      %p73 = scmp.ne.s32.totalorder %s62, %s65
      %p74 = scmp.eq.s32.totalorder %s17, 1
      %p75 = por %p73, %p74
      %p76 = scmp.ne.s32.totalorder %s65, %s66
      %p77 = scmp.eq.s32.totalorder %s17, 0
      %p78 = por %p76, %p77
      %p79 = scmp.ne.s32.totalorder %s65, %s66
      %p80 = scmp.eq.s32.totalorder %s18, 1
      %p81 = por %p79, %p80
      %p83 = scmp.ne.s32.totalorder %s66, %s82
      %p84 = scmp.eq.s32.totalorder %s18, 0
      %p85 = por %p83, %p84
      %s87 = sadd.s32 %s86, 1
      %p90 = scmp.eq.s32.totalorder %s12, 1
      %p91 = scmp.ne.s32.totalorder %s86, %s88
      %p92 = scmp.eq.s32.totalorder %s12, 0
      %p93 = por %p91, %p92
      %p94 = scmp.ne.s32.totalorder %s86, %s88
      %p95 = scmp.eq.s32.totalorder %s17, 1
      %p96 = por %p94, %p95
      %p97 = scmp.ne.s32.totalorder %s88, %s89
      %p98 = scmp.eq.s32.totalorder %s17, 0
      %p99 = por %p97, %p98
      %p100 = scmp.ne.s32.totalorder %s88, %s89
      %p101 = scmp.eq.s32.totalorder %s18, 1
      %p102 = por %p100, %p101
      %p104 = scmp.ne.s32.totalorder %s89, %s103
      %p105 = scmp.eq.s32.totalorder %s18, 0
      %p106 = por %p104, %p105
      %s107 = ssub.s32 %s19, %s31
      %p108 = scmp.eq.s32.totalorder %s107, 0
      %s110 = sadd.s32 %s109, 1
      %s111 = scalar_select %p108, %s109, %s110
      %p114 = pneg %p108
      %p115 = scmp.eq.s32.totalorder %s12, 1
      %p116 = por %p114, %p115
      %p117 = scmp.ne.s32.totalorder %s109, %s112
      %p118 = scmp.eq.s32.totalorder %s12, 0
      %p119 = por %p117, %p118
      %p120 = scmp.ne.s32.totalorder %s109, %s112
      %p121 = scmp.eq.s32.totalorder %s17, 1
      %p122 = por %p120, %p121
      %p123 = scmp.ne.s32.totalorder %s112, %s113
      %p124 = scmp.eq.s32.totalorder %s17, 0
      %p125 = por %p123, %p124
      %p126 = scmp.ne.s32.totalorder %s112, %s113
      %p127 = scmp.eq.s32.totalorder %s18, 1
      %p128 = por %p126, %p127
      %p130 = scmp.ne.s32.totalorder %s113, %s129
      %p131 = scmp.eq.s32.totalorder %s18, 0
      %p132 = por %p130, %p131
      %p133 = scmp.le.s32.totalorder 1, %s12
      %p134 = scmp.lt.s32.totalorder %s12, 3
      %p135 = pnand %p133, %p134
      %p136 = pneg %p135
      // Predicated region
      $region9: #{tpu_custom_call.1} parent=5 // pred_check
        _
      $region10: #{tpu_custom_call.1} parent=5 // pred_check_branch
        %138 = sbr.rel (%p135) target = $region12
      $region11: #{tpu_custom_call.1} parent=5 // pred_region
        %s139 = ssub.s32 %s12, 1
        // Predicated region
        $region13: #{tpu_custom_call.1} parent=11 // pred_check
          %p140 = pneg %p78
        $region14: #{tpu_custom_call.1} parent=11 // pred_check_branch
          %142 = sbr.rel (%p140) target = $region16
        $region15: #{tpu_custom_call.1} parent=11 // pred_region
          %p143 = scmp.lt.s32.totalorder %s22, 0
          %s144 = scalar_select %p143, %s22, 0
          %s145 = smul.addr %s144, 8
          %s146 = scalar_lea.vmem %s1, %s145
        $region16: #{tpu_custom_call.1} parent=11 // pred_fallthru
          _
        // Predicated region
        $region17: #{tpu_custom_call.1} parent=11 // pred_check
          %p147 = pneg %p99
        $region18: #{tpu_custom_call.1} parent=11 // pred_check_branch
          %149 = sbr.rel (%p147) target = $region20
        $region19: #{tpu_custom_call.1} parent=11 // pred_region
          _
        $region20: #{tpu_custom_call.1} parent=11 // pred_fallthru
          _
      $region12: #{tpu_custom_call.1} parent=5 // pred_fallthru
        _
      %p150 = scmp.lt.s32.totalorder %s12, 2
      // Predicated region
      $region21: #{tpu_custom_call.1} parent=5 // pred_check
        %p151 = pneg %p150
      $region22: #{tpu_custom_call.1} parent=5 // pred_check_branch
        %153 = sbr.rel (%p151) target = $region24
      $region23: #{tpu_custom_call.1} parent=5 // pred_region
        // Predicated region
        $region25: #{tpu_custom_call.1} parent=23 // pred_check
          %p154 = pneg %p46
        $region26: #{tpu_custom_call.1} parent=23 // pred_check_branch
          %156 = sbr.rel (%p154) target = $region28
        $region27: #{tpu_custom_call.1} parent=23 // pred_region
          %p157 = scmp.lt.s32.totalorder %s19, 1
          %s158 = scalar_select %p157, %s19, 1
          %p159 = scmp.lt.s32.totalorder %s20, 0
          %s160 = scalar_select %p159, %s20, 0
          %s161 = smul.addr %s160, 4
          %s162 = smul.addr %s158, 4
          %s163 = sadd.s32 %s161, %s162
          %s164 = smul.addr %s163, 8
          %s165 = scalar_lea.vmem %s0, %s164
        $region28: #{tpu_custom_call.1} parent=23 // pred_fallthru
          _
      $region24: #{tpu_custom_call.1} parent=5 // pred_fallthru
        _
      %p166 = scmp.le.s32.totalorder 1, %s12
      %p167 = scmp.lt.s32.totalorder %s12, 3
      %p168 = pnand %p166, %p167
      %p169 = pneg %p168
      // Predicated region
      $region29: #{tpu_custom_call.1} parent=5 // pred_check
        _
      $region30: #{tpu_custom_call.1} parent=5 // pred_check_branch
        %171 = sbr.rel (%p168) target = $region32
      $region31: #{tpu_custom_call.1} parent=5 // pred_region
        %s172 = ssub.s32 %s12, 1
        %p173 = scmp.lt.s32.totalorder %s21, 1
        %s174 = scalar_select %p173, %s21, 1
        %p175 = scmp.lt.s32.totalorder %s22, 0
        %s176 = scalar_select %p175, %s22, 0
        %s177 = smul.addr %s176, 4
        %s178 = smul.addr %s174, 4
        %s179 = sadd.s32 %s177, %s178
        %s180 = smul.addr %s179, 8
        %s181 = scalar_lea.vmem %s0, %s180
        %p182 = pneg %p52
        %p183 = pneg %p49
        %p184 = scmp.lt.s32.totalorder %s22, 0
        %s185 = scalar_select %p184, %s22, 0
        %s186 = smul.addr %s185, 8
        %s187 = scalar_lea.vmem %s1, %s186
        %p188 = pneg %p78
        %p189 = pneg %p75
        %p190 = pneg %p99
        %p191 = pneg %p96
        %p192 = pneg %p125
        %p193 = pneg %p122
        %s194 = sand.u32 %s112, 1
        %s195 = scalar_lea.sflag [#allocation5], %s194
        %s196 = sand.u32 %s112, 1
        %s197 = smul.addr %s196, 24
        %s198 = scalar_lea.vmem [#allocation4], %s197
        %p199 = scmp.lt.s32.totalorder %s21, 1
        %s200 = scalar_select %p199, %s21, 1
        %p201 = scmp.lt.s32.totalorder %s22, 0
        %s202 = scalar_select %p201, %s22, 0
        %s203 = smul.addr %s202, 4
        %s204 = smul.addr %s200, 4
        %s205 = sadd.s32 %s203, %s204
        %s206 = smul.addr %s205, 8
        %s207 = scalar_lea.vmem %s0, %s206
        %p208 = scmp.lt.s32.totalorder %s22, 0
        %s209 = scalar_select %p208, %s22, 0
        %s210 = smul.addr %s209, 8
        %s211 = scalar_lea.vmem %s1, %s210
        %p212 = scmp.eq.s32.totalorder %s22, 0
        // Predicated region
        $region33: #{tpu_custom_call.1} parent=31 // pred_check
          %p213 = pneg %p212
        $region34: #{tpu_custom_call.1} parent=31 // pred_check_branch
          %215 = sbr.rel (%p213) target = $region36
        $region35: #{tpu_custom_call.1} parent=31 // pred_region
          %216 = vst [vmem:[#allocation3] sm:$0xff] 0.0
          %217 = vst [vmem:[#allocation3 + $0x8] sm:$0xff] 0.0
          %218 = vst [vmem:[#allocation3 + $0x10] sm:$0xff] 0.0
        $region36: #{tpu_custom_call.1} parent=31 // pred_fallthru
          _
        %v219 = vld [vmem:[%s211] sm:$0xff]
        %v220 = vld [vmem:[%s211 + $0x8] sm:$0xff]
        %v221 = vld [vmem:[%s211 + $0x10] sm:$0xff]
        %v222 = vld [vmem:[%s211 + $0x18] sm:$0xff]
        %v223 = vld [vmem:[%s211 + $0x20] sm:$0xff]
        %v224 = vld [vmem:[%s211 + $0x28] sm:$0xff]
        %v225 = vld [vmem:[%s211 + $0x30] sm:$0xff]
        %v226 = vld [vmem:[%s211 + $0x38] sm:$0xff]
        %v227 = vld [vmem:[%s211 + $0x40] sm:$0xff]
        %v228 = vld [vmem:[%s207] sm:$0xff]
        %v229 = vld [vmem:[%s207 + $0x8] sm:$0xff]
        %v230 = vld [vmem:[%s207 + $0x10] sm:$0xff]
        %v231 = vld [vmem:[%s207 + $0x18] sm:$0xff]
        %vm232 = vcmask 64512
        %v234 = vsel %vm232, %v219, 0
        %v237 = vsel %vm232, %v220, 0
        %v240 = vsel %vm232, %v221, 0
        %v243 = vsel %vm232, %v222, 0
        %v246 = vsel %vm232, %v223, 0
        %v249 = vsel %vm232, %v224, 0
        %v252 = vsel %vm232, %v225, 0
        %v255 = vsel %vm232, %v226, 0
        %v258 = vsel %vm232, %v227, 0
        %260 = vmatprep.subr.mxu0 0.0
        %261 = vmatpush1.msra.mxu0 0.0
        %262 = vmatprep.subr.mxu0 0.0
        %263 = vmatpush1.msra.mxu0 0.0
        %264 = vmatprep.subr.mxu0 0.0
        %265 = vmatpush1.msra.mxu0 0.0
        %266 = vmatprep.subr.mxu0 0.0
        %267 = vmatpush1.msra.mxu0 0.0
        %268 = vmatprep.subr.mxu0 0.0
        %269 = vmatpush1.msra.mxu0 0.0
        %270 = vmatprep.subr.mxu0 0.0
        %271 = vmatpush1.msra.mxu0 0.0
        %272 = vmatprep.subr.mxu0 0.0
        %273 = vmatpush1.msra.mxu0 0.0
        %274 = vmatprep.subr.mxu0 0.0
        %275 = vmatpush1.msra.mxu0 0.0
        %276 = vmatprep.subr.mxu0 0.0
        %277 = vmatpush1.msra.mxu0 0.0
        %278 = vmatprep.subr.mxu0 0.0
        %279 = vmatpush1.msra.mxu0 0.0
        %280 = vmatprep.subr.mxu0 0.0
        %281 = vmatpush1.msra.mxu0 0.0
        %282 = vmatprep.subr.mxu0 0.0
        %283 = vmatpush1.msra.mxu0 0.0
        %284 = vmatprep.subr.mxu0 0.0
        %285 = vmatpush1.msra.mxu0 0.0
        %286 = vmatprep.subr.mxu0 0.0
        %287 = vmatpush1.msra.mxu0 0.0
        %288 = vmatprep.subr.mxu0 0.0
        %289 = vmatpush1.msra.mxu0 0.0
        %290 = vmatprep.subr.mxu0 %v229
        %291 = vmatpush1.msra.mxu0 %v228
        %292 = vmatprep.subr.mxu0 0.0
        %293 = vmatpush2.msra.mxu0 0.0
        %294 = vmatprep.subr.mxu0 0.0
        %295 = vmatpush2.msra.mxu0 0.0
        %296 = vmatprep.subr.mxu0 0.0
        %297 = vmatpush2.msra.mxu0 0.0
        %298 = vmatprep.subr.mxu0 0.0
        %299 = vmatpush2.msra.mxu0 0.0
        %300 = vmatprep.subr.mxu0 0.0
        %301 = vmatpush2.msra.mxu0 0.0
        %302 = vmatprep.subr.mxu0 0.0
        %303 = vmatpush2.msra.mxu0 0.0
        %304 = vmatprep.subr.mxu0 0.0
        %305 = vmatpush2.msra.mxu0 0.0
        %306 = vmatprep.subr.mxu0 0.0
        %307 = vmatpush2.msra.mxu0 0.0
        %308 = vmatprep.subr.mxu0 0.0
        %309 = vmatpush2.msra.mxu0 0.0
        %310 = vmatprep.subr.mxu0 0.0
        %311 = vmatpush2.msra.mxu0 0.0
        %312 = vmatprep.subr.mxu0 0.0
        %313 = vmatpush2.msra.mxu0 0.0
        %314 = vmatprep.subr.mxu0 0.0
        %315 = vmatpush2.msra.mxu0 0.0
        %316 = vmatprep.subr.mxu0 0.0
        %317 = vmatpush2.msra.mxu0 0.0
        %318 = vmatprep.subr.mxu0 0.0
        %319 = vmatpush2.msra.mxu0 0.0
        %320 = vmatprep.subr.mxu0 0.0
        %321 = vmatpush2.msra.mxu0 0.0
        %322 = vmatprep.subr.mxu0 0.0
        %323 = vmatpush2.msra.mxu0 0.0
        %324 = vmatprep.mubr.f32.mxu0 0.0
        %325 = vmatmul.mubr.f32.gmra.mxu0 %v234
        %v326 = vpop.f32.mrf.mxu0
        %v327 = vadd.f32 0.0, %v326
        %v328 = vpop.f32.mrf.mxu0
        %v329 = vadd.f32 0.0, %v328
        %330 = vmatprep.mubr.f32.mxu0 0.0
        %331 = vmatmul.mubr.f32.gmra.mxu0 %v237
        %v332 = vpop.f32.mrf.mxu0
        %v333 = vadd.f32 0.0, %v332
        %v334 = vpop.f32.mrf.mxu0
        %v335 = vadd.f32 0.0, %v334
        %336 = vmatprep.mubr.f32.mxu0 0.0
        %337 = vmatmul.mubr.f32.gmra.mxu0 %v240
        %v338 = vpop.f32.mrf.mxu0
        %v339 = vadd.f32 0.0, %v338
        %v340 = vpop.f32.mrf.mxu0
        %v341 = vadd.f32 0.0, %v340
        %342 = vmatprep.mubr.f32.mxu0 0.0
        %343 = vmatmul.mubr.f32.gmra.mxu0 %v243
        %v344 = vpop.f32.mrf.mxu0
        %v345 = vadd.f32 0.0, %v344
        %v346 = vpop.f32.mrf.mxu0
        %v347 = vadd.f32 0.0, %v346
        %348 = vmatprep.mubr.f32.mxu0 0.0
        %349 = vmatmul.mubr.f32.gmra.mxu0 %v246
        %v350 = vpop.f32.mrf.mxu0
        %v351 = vadd.f32 0.0, %v350
        %v352 = vpop.f32.mrf.mxu0
        %v353 = vadd.f32 0.0, %v352
        %354 = vmatprep.mubr.f32.mxu0 0.0
        %355 = vmatmul.mubr.f32.gmra.mxu0 %v249
        %v356 = vpop.f32.mrf.mxu0
        %v357 = vadd.f32 0.0, %v356
        %v358 = vpop.f32.mrf.mxu0
        %v359 = vadd.f32 0.0, %v358
        %360 = vmatprep.mubr.f32.mxu0 0.0
        %361 = vmatmul.mubr.f32.gmra.mxu0 %v252
        %v362 = vpop.f32.mrf.mxu0
        %v363 = vadd.f32 0.0, %v362
        %v364 = vpop.f32.mrf.mxu0
        %v365 = vadd.f32 0.0, %v364
        %366 = vmatprep.mubr.f32.mxu0 0.0
        %367 = vmatmul.mubr.f32.gmra.mxu0 %v255
        %v368 = vpop.f32.mrf.mxu0
        %v369 = vadd.f32 0.0, %v368
        %v370 = vpop.f32.mrf.mxu0
        %v371 = vadd.f32 0.0, %v370
        %372 = vmatprep.mubr.f32.mxu0 0.0
        %373 = vmatmul.mubr.f32.gmra.mxu0 %v258
        %v374 = vpop.f32.mrf.mxu0
        %v375 = vadd.f32 0.0, %v374
        %v376 = vpop.f32.mrf.mxu0
        %v377 = vadd.f32 0.0, %v376
        %378 = vdwg.mxu0
        %379 = vmatprep.subr.mxu0 0.0
        %380 = vmatpush1.msra.mxu0 0.0
        %381 = vmatprep.subr.mxu0 0.0
        %382 = vmatpush1.msra.mxu0 0.0
        %383 = vmatprep.subr.mxu0 0.0
        %384 = vmatpush1.msra.mxu0 0.0
        %385 = vmatprep.subr.mxu0 0.0
        %386 = vmatpush1.msra.mxu0 0.0
        %387 = vmatprep.subr.mxu0 0.0
        %388 = vmatpush1.msra.mxu0 0.0
        %389 = vmatprep.subr.mxu0 0.0
        %390 = vmatpush1.msra.mxu0 0.0
        %391 = vmatprep.subr.mxu0 0.0
        %392 = vmatpush1.msra.mxu0 0.0
        %393 = vmatprep.subr.mxu0 0.0
        %394 = vmatpush1.msra.mxu0 0.0
        %395 = vmatprep.subr.mxu0 0.0
        %396 = vmatpush1.msra.mxu0 0.0
        %397 = vmatprep.subr.mxu0 0.0
        %398 = vmatpush1.msra.mxu0 0.0
        %399 = vmatprep.subr.mxu0 0.0
        %400 = vmatpush1.msra.mxu0 0.0
        %401 = vmatprep.subr.mxu0 0.0
        %402 = vmatpush1.msra.mxu0 0.0
        %403 = vmatprep.subr.mxu0 0.0
        %404 = vmatpush1.msra.mxu0 0.0
        %405 = vmatprep.subr.mxu0 0.0
        %406 = vmatpush1.msra.mxu0 0.0
        %407 = vmatprep.subr.mxu0 0.0
        %408 = vmatpush1.msra.mxu0 0.0
        %409 = vmatprep.subr.mxu0 %v231
        %410 = vmatpush1.msra.mxu0 %v230
        %411 = vmatprep.subr.mxu0 0.0
        %412 = vmatpush2.msra.mxu0 0.0
        %413 = vmatprep.subr.mxu0 0.0
        %414 = vmatpush2.msra.mxu0 0.0
        %415 = vmatprep.subr.mxu0 0.0
        %416 = vmatpush2.msra.mxu0 0.0
        %417 = vmatprep.subr.mxu0 0.0
        %418 = vmatpush2.msra.mxu0 0.0
        %419 = vmatprep.subr.mxu0 0.0
        %420 = vmatpush2.msra.mxu0 0.0
        %421 = vmatprep.subr.mxu0 0.0
        %422 = vmatpush2.msra.mxu0 0.0
        %423 = vmatprep.subr.mxu0 0.0
        %424 = vmatpush2.msra.mxu0 0.0
        %425 = vmatprep.subr.mxu0 0.0
        %426 = vmatpush2.msra.mxu0 0.0
        %427 = vmatprep.subr.mxu0 0.0
        %428 = vmatpush2.msra.mxu0 0.0
        %429 = vmatprep.subr.mxu0 0.0
        %430 = vmatpush2.msra.mxu0 0.0
        %431 = vmatprep.subr.mxu0 0.0
        %432 = vmatpush2.msra.mxu0 0.0
        %433 = vmatprep.subr.mxu0 0.0
        %434 = vmatpush2.msra.mxu0 0.0
        %435 = vmatprep.subr.mxu0 0.0
        %436 = vmatpush2.msra.mxu0 0.0
        %437 = vmatprep.subr.mxu0 0.0
        %438 = vmatpush2.msra.mxu0 0.0
        %439 = vmatprep.subr.mxu0 0.0
        %440 = vmatpush2.msra.mxu0 0.0
        %441 = vmatprep.subr.mxu0 0.0
        %442 = vmatpush2.msra.mxu0 0.0
        %443 = vmatprep.mubr.f32.mxu0 0.0
        %444 = vmatmul.mubr.f32.gmra.mxu0 %v234
        %v445 = vpop.f32.mrf.mxu0
        %v446 = vadd.f32 0.0, %v445
        %v447 = vpop.f32.mrf.mxu0
        %v448 = vadd.f32 0.0, %v447
        %449 = vmatprep.mubr.f32.mxu0 0.0
        %450 = vmatmul.mubr.f32.gmra.mxu0 %v237
        %v451 = vpop.f32.mrf.mxu0
        %v452 = vadd.f32 0.0, %v451
        %v453 = vpop.f32.mrf.mxu0
        %v454 = vadd.f32 0.0, %v453
        %455 = vmatprep.mubr.f32.mxu0 0.0
        %456 = vmatmul.mubr.f32.gmra.mxu0 %v240
        %v457 = vpop.f32.mrf.mxu0
        %v458 = vadd.f32 0.0, %v457
        %v459 = vpop.f32.mrf.mxu0
        %v460 = vadd.f32 0.0, %v459
        %461 = vmatprep.mubr.f32.mxu0 0.0
        %462 = vmatmul.mubr.f32.gmra.mxu0 %v243
        %v463 = vpop.f32.mrf.mxu0
        %v464 = vadd.f32 0.0, %v463
        %v465 = vpop.f32.mrf.mxu0
        %v466 = vadd.f32 0.0, %v465
        %467 = vmatprep.mubr.f32.mxu0 0.0
        %468 = vmatmul.mubr.f32.gmra.mxu0 %v246
        %v469 = vpop.f32.mrf.mxu0
        %v470 = vadd.f32 0.0, %v469
        %v471 = vpop.f32.mrf.mxu0
        %v472 = vadd.f32 0.0, %v471
        %473 = vmatprep.mubr.f32.mxu0 0.0
        %474 = vmatmul.mubr.f32.gmra.mxu0 %v249
        %v475 = vpop.f32.mrf.mxu0
        %v476 = vadd.f32 0.0, %v475
        %v477 = vpop.f32.mrf.mxu0
        %v478 = vadd.f32 0.0, %v477
        %479 = vmatprep.mubr.f32.mxu0 0.0
        %480 = vmatmul.mubr.f32.gmra.mxu0 %v252
        %v481 = vpop.f32.mrf.mxu0
        %v482 = vadd.f32 0.0, %v481
        %v483 = vpop.f32.mrf.mxu0
        %v484 = vadd.f32 0.0, %v483
        %485 = vmatprep.mubr.f32.mxu0 0.0
        %486 = vmatmul.mubr.f32.gmra.mxu0 %v255
        %v487 = vpop.f32.mrf.mxu0
        %v488 = vadd.f32 0.0, %v487
        %v489 = vpop.f32.mrf.mxu0
        %v490 = vadd.f32 0.0, %v489
        %491 = vmatprep.mubr.f32.mxu0 0.0
        %492 = vmatmul.mubr.f32.gmra.mxu0 %v258
        %v493 = vpop.f32.mrf.mxu0
        %v494 = vadd.f32 0.0, %v493
        %v495 = vpop.f32.mrf.mxu0
        %v496 = vadd.f32 0.0, %v495
        %497 = vdwg.mxu0
        %498 = vst [vmem:[#allocation2] sm:$0xff] %v327
        %499 = vst [vmem:[#allocation2 + $0x8] sm:$0xff] %v329
        %500 = vst [vmem:[#allocation2 + $0x10] sm:$0xff] %v446
        %501 = vst [vmem:[#allocation2 + $0x18] sm:$0xff] %v448
        %502 = vst [vmem:[#allocation2 + $0x20] sm:$0xff] %v333
        %503 = vst [vmem:[#allocation2 + $0x28] sm:$0xff] %v335
        %504 = vst [vmem:[#allocation2 + $0x30] sm:$0xff] %v452
        %505 = vst [vmem:[#allocation2 + $0x38] sm:$0xff] %v454
        %506 = vst [vmem:[#allocation2 + $0x40] sm:$0xff] %v339
        %507 = vst [vmem:[#allocation2 + $0x48] sm:$0xff] %v341
        %508 = vst [vmem:[#allocation2 + $0x50] sm:$0xff] %v458
        %509 = vst [vmem:[#allocation2 + $0x58] sm:$0xff] %v460
        %510 = vst [vmem:[#allocation2 + $0x60] sm:$0xff] %v345
        %511 = vst [vmem:[#allocation2 + $0x68] sm:$0xff] %v347
        %512 = vst [vmem:[#allocation2 + $0x70] sm:$0xff] %v464
        %513 = vst [vmem:[#allocation2 + $0x78] sm:$0xff] %v466
        %514 = vst [vmem:[#allocation2 + $0x80] sm:$0xff] %v351
        %515 = vst [vmem:[#allocation2 + $0x88] sm:$0xff] %v353
        %516 = vst [vmem:[#allocation2 + $0x90] sm:$0xff] %v470
        %517 = vst [vmem:[#allocation2 + $0x98] sm:$0xff] %v472
        %518 = vst [vmem:[#allocation2 + $0xa0] sm:$0xff] %v357
        %519 = vst [vmem:[#allocation2 + $0xa8] sm:$0xff] %v359
        %520 = vst [vmem:[#allocation2 + $0xb0] sm:$0xff] %v476
        %521 = vst [vmem:[#allocation2 + $0xb8] sm:$0xff] %v478
        %522 = vst [vmem:[#allocation2 + $0xc0] sm:$0xff] %v363
        %523 = vst [vmem:[#allocation2 + $0xc8] sm:$0xff] %v365
        %524 = vst [vmem:[#allocation2 + $0xd0] sm:$0xff] %v482
        %525 = vst [vmem:[#allocation2 + $0xd8] sm:$0xff] %v484
        %526 = vst [vmem:[#allocation2 + $0xe0] sm:$0xff] %v369
        %527 = vst [vmem:[#allocation2 + $0xe8] sm:$0xff] %v371
        %528 = vst [vmem:[#allocation2 + $0xf0] sm:$0xff] %v488
        %529 = vst [vmem:[#allocation2 + $0xf8] sm:$0xff] %v490
        %530 = vst [vmem:[#allocation2 + $0x100] sm:$0xff] %v375
        %531 = vst [vmem:[#allocation2 + $0x108] sm:$0xff] %v377
        %532 = vst [vmem:[#allocation2 + $0x110] sm:$0xff] %v494
        %533 = vst [vmem:[#allocation2 + $0x118] sm:$0xff] %v496
        %v534 = vld [vmem:[#allocation3] sm:$0xff]
        %v535 = vld [vmem:[#allocation3 + $0x8] sm:$0xff]
        %v536 = vld [vmem:[#allocation3 + $0x10] sm:$0xff]
        %v537 = vld [vmem:[#allocation2] sm:$0xff]
        %v538 = vld [vmem:[#allocation2 + $0x8] sm:$0xff]
        %v539 = vld [vmem:[#allocation2 + $0x10] sm:$0xff]
        %v540 = vadd.f32 %v534, %v537
        %v541 = vadd.f32 %v535, %v538
        %v542 = vadd.f32 %v536, %v539
        %543 = vst [vmem:[#allocation3] sm:$0xff] %v540
        %544 = vst [vmem:[#allocation3 + $0x8] sm:$0xff] %v541
        %545 = vst [vmem:[#allocation3 + $0x10] sm:$0xff] %v542
        %v546 = vld [vmem:[#allocation3] sm:$0xff]
        %v547 = vld [vmem:[#allocation3 + $0x8] sm:$0xff]
        %v548 = vld [vmem:[#allocation3 + $0x10] sm:$0xff]
        %v549 = vld [vmem:[#allocation2 + $0x20] sm:$0xff]
        %v550 = vld [vmem:[#allocation2 + $0x28] sm:$0xff]
        %v551 = vld [vmem:[#allocation2 + $0x30] sm:$0xff]
        %v552 = vld [vmem:[#allocation2 + $0x38] sm:$0xff]
        %557 = vrot.lane.b32.xlu0 %v549, 127
        %v558 = vpop.permute.xlu0 %557
        %559 = vrot.lane.b32.xlu0 %v550, 127
        %v560 = vpop.permute.xlu0 %559
        %561 = vrot.lane.b32.xlu0 %v551, 127
        %v562 = vpop.permute.xlu0 %561
        %563 = vrot.lane.b32.xlu0 %v552, 127
        %v564 = vpop.permute.xlu0 %563
        %vm565 = vcmask 1039360
        %v566 = vsel %vm565, %v558, %v560
        %v567 = vsel %vm565, %v560, %v562
        %v568 = vsel %vm565, %v562, %v564
        %v572 = vadd.f32 %v546, %v566
        %v573 = vadd.f32 %v547, %v567
        %v574 = vadd.f32 %v548, %v568
        %575 = vst [vmem:[#allocation3] sm:$0xff] %v572
        %576 = vst [vmem:[#allocation3 + $0x8] sm:$0xff] %v573
        %577 = vst [vmem:[#allocation3 + $0x10] sm:$0xff] %v574
        %v578 = vld [vmem:[#allocation3] sm:$0xff]
        %v579 = vld [vmem:[#allocation3 + $0x8] sm:$0xff]
        %v580 = vld [vmem:[#allocation3 + $0x10] sm:$0xff]
        %v581 = vld [vmem:[#allocation2 + $0x40] sm:$0xff]
        %v582 = vld [vmem:[#allocation2 + $0x48] sm:$0xff]
        %v583 = vld [vmem:[#allocation2 + $0x50] sm:$0xff]
        %v584 = vld [vmem:[#allocation2 + $0x58] sm:$0xff]
        %589 = vrot.lane.b32.xlu0 %v581, 126
        %v590 = vpop.permute.xlu0 %589
        %591 = vrot.lane.b32.xlu0 %v582, 126
        %v592 = vpop.permute.xlu0 %591
        %593 = vrot.lane.b32.xlu0 %v583, 126
        %v594 = vpop.permute.xlu0 %593
        %595 = vrot.lane.b32.xlu0 %v584, 126
        %v596 = vpop.permute.xlu0 %595
        %vm597 = vcmask 1031168
        %v598 = vsel %vm597, %v590, %v592
        %v599 = vsel %vm597, %v592, %v594
        %v600 = vsel %vm597, %v594, %v596
        %v604 = vadd.f32 %v578, %v598
        %v605 = vadd.f32 %v579, %v599
        %v606 = vadd.f32 %v580, %v600
        %607 = vst [vmem:[#allocation3] sm:$0xff] %v604
        %608 = vst [vmem:[#allocation3 + $0x8] sm:$0xff] %v605
        %609 = vst [vmem:[#allocation3 + $0x10] sm:$0xff] %v606
        %v610 = vld [vmem:[#allocation3] sm:$0xff]
        %v611 = vld [vmem:[#allocation3 + $0x8] sm:$0xff]
        %v612 = vld [vmem:[#allocation3 + $0x10] sm:$0xff]
        %v613 = vld [vmem:[#allocation2 + $0x60] sm:$0xff]
        %v614 = vld [vmem:[#allocation2 + $0x68] sm:$0xff]
        %v615 = vld [vmem:[#allocation2 + $0x70] sm:$0xff]
        %v616 = vld [vmem:[#allocation2 + $0x78] sm:$0xff]
        %621 = vrot.lane.b32.xlu0 %v613, 110
        %v622 = vpop.permute.xlu0 %621
        %623 = vrot.lane.b32.xlu0 %v614, 110
        %v624 = vpop.permute.xlu0 %623
        %625 = vrot.lane.b32.xlu0 %v615, 110
        %v626 = vpop.permute.xlu0 %625
        %627 = vrot.lane.b32.xlu0 %v616, 110
        %v628 = vpop.permute.xlu0 %627
        %vm629 = vcmask 900096
        %v630 = vsel %vm629, %v622, %v624
        %v631 = vsel %vm629, %v624, %v626
        %v632 = vsel %vm629, %v626, %v628
        %v636 = vadd.f32 %v610, %v630
        %v637 = vadd.f32 %v611, %v631
        %v638 = vadd.f32 %v612, %v632
        %639 = vst [vmem:[#allocation3] sm:$0xff] %v636
        %640 = vst [vmem:[#allocation3 + $0x8] sm:$0xff] %v637
        %641 = vst [vmem:[#allocation3 + $0x10] sm:$0xff] %v638
        %v642 = vld [vmem:[#allocation3] sm:$0xff]
        %v643 = vld [vmem:[#allocation3 + $0x8] sm:$0xff]
        %v644 = vld [vmem:[#allocation3 + $0x10] sm:$0xff]
        %v645 = vld [vmem:[#allocation2 + $0x80] sm:$0xff]
        %v646 = vld [vmem:[#allocation2 + $0x88] sm:$0xff]
        %v647 = vld [vmem:[#allocation2 + $0x90] sm:$0xff]
        %v648 = vld [vmem:[#allocation2 + $0x98] sm:$0xff]
        %653 = vrot.lane.b32.xlu0 %v645, 109
        %v654 = vpop.permute.xlu0 %653
        %655 = vrot.lane.b32.xlu0 %v646, 109
        %v656 = vpop.permute.xlu0 %655
        %657 = vrot.lane.b32.xlu0 %v647, 109
        %v658 = vpop.permute.xlu0 %657
        %659 = vrot.lane.b32.xlu0 %v648, 109
        %v660 = vpop.permute.xlu0 %659
        %vm661 = vcmask 891904
        %v662 = vsel %vm661, %v654, %v656
        %v663 = vsel %vm661, %v656, %v658
        %v664 = vsel %vm661, %v658, %v660
        %v668 = vadd.f32 %v642, %v662
        %v669 = vadd.f32 %v643, %v663
        %v670 = vadd.f32 %v644, %v664
        %671 = vst [vmem:[#allocation3] sm:$0xff] %v668
        %672 = vst [vmem:[#allocation3 + $0x8] sm:$0xff] %v669
        %673 = vst [vmem:[#allocation3 + $0x10] sm:$0xff] %v670
        %v674 = vld [vmem:[#allocation3] sm:$0xff]
        %v675 = vld [vmem:[#allocation3 + $0x8] sm:$0xff]
        %v676 = vld [vmem:[#allocation3 + $0x10] sm:$0xff]
        %v677 = vld [vmem:[#allocation2 + $0xa0] sm:$0xff]
        %v678 = vld [vmem:[#allocation2 + $0xa8] sm:$0xff]
        %v679 = vld [vmem:[#allocation2 + $0xb0] sm:$0xff]
        %v680 = vld [vmem:[#allocation2 + $0xb8] sm:$0xff]
        %685 = vrot.lane.b32.xlu0 %v677, 108
        %v686 = vpop.permute.xlu0 %685
        %687 = vrot.lane.b32.xlu0 %v678, 108
        %v688 = vpop.permute.xlu0 %687
        %689 = vrot.lane.b32.xlu0 %v679, 108
        %v690 = vpop.permute.xlu0 %689
        %691 = vrot.lane.b32.xlu0 %v680, 108
        %v692 = vpop.permute.xlu0 %691
        %vm693 = vcmask 883712
        %v694 = vsel %vm693, %v686, %v688
        %v695 = vsel %vm693, %v688, %v690
        %v696 = vsel %vm693, %v690, %v692
        %v700 = vadd.f32 %v674, %v694
        %v701 = vadd.f32 %v675, %v695
        %v702 = vadd.f32 %v676, %v696
        %703 = vst [vmem:[#allocation3] sm:$0xff] %v700
        %704 = vst [vmem:[#allocation3 + $0x8] sm:$0xff] %v701
        %705 = vst [vmem:[#allocation3 + $0x10] sm:$0xff] %v702
        %v706 = vld [vmem:[#allocation3] sm:$0xff]
        %v707 = vld [vmem:[#allocation3 + $0x8] sm:$0xff]
        %v708 = vld [vmem:[#allocation3 + $0x10] sm:$0xff]
        %v709 = vld [vmem:[#allocation2 + $0xc0] sm:$0xff]
        %v710 = vld [vmem:[#allocation2 + $0xc8] sm:$0xff]
        %v711 = vld [vmem:[#allocation2 + $0xd0] sm:$0xff]
        %v712 = vld [vmem:[#allocation2 + $0xd8] sm:$0xff]
        %717 = vrot.lane.b32.xlu0 %v709, 92
        %v718 = vpop.permute.xlu0 %717
        %719 = vrot.lane.b32.xlu0 %v710, 92
        %v720 = vpop.permute.xlu0 %719
        %721 = vrot.lane.b32.xlu0 %v711, 92
        %v722 = vpop.permute.xlu0 %721
        %723 = vrot.lane.b32.xlu0 %v712, 92
        %v724 = vpop.permute.xlu0 %723
        %vm725 = vcmask 752640
        %v726 = vsel %vm725, %v718, %v720
        %v727 = vsel %vm725, %v720, %v722
        %v728 = vsel %vm725, %v722, %v724
        %v732 = vadd.f32 %v706, %v726
        %v733 = vadd.f32 %v707, %v727
        %v734 = vadd.f32 %v708, %v728
        %735 = vst [vmem:[#allocation3] sm:$0xff] %v732
        %736 = vst [vmem:[#allocation3 + $0x8] sm:$0xff] %v733
        %737 = vst [vmem:[#allocation3 + $0x10] sm:$0xff] %v734
        %v738 = vld [vmem:[#allocation3] sm:$0xff]
        %v739 = vld [vmem:[#allocation3 + $0x8] sm:$0xff]
        %v740 = vld [vmem:[#allocation3 + $0x10] sm:$0xff]
        %v741 = vld [vmem:[#allocation2 + $0xe0] sm:$0xff]
        %v742 = vld [vmem:[#allocation2 + $0xe8] sm:$0xff]
        %v743 = vld [vmem:[#allocation2 + $0xf0] sm:$0xff]
        %v744 = vld [vmem:[#allocation2 + $0xf8] sm:$0xff]
        %749 = vrot.lane.b32.xlu0 %v741, 91
        %v750 = vpop.permute.xlu0 %749
        %751 = vrot.lane.b32.xlu0 %v742, 91
        %v752 = vpop.permute.xlu0 %751
        %753 = vrot.lane.b32.xlu0 %v743, 91
        %v754 = vpop.permute.xlu0 %753
        %755 = vrot.lane.b32.xlu0 %v744, 91
        %v756 = vpop.permute.xlu0 %755
        %vm757 = vcmask 744448
        %v758 = vsel %vm757, %v750, %v752
        %v759 = vsel %vm757, %v752, %v754
        %v760 = vsel %vm757, %v754, %v756
        %v764 = vadd.f32 %v738, %v758
        %v765 = vadd.f32 %v739, %v759
        %v766 = vadd.f32 %v740, %v760
        %767 = vst [vmem:[#allocation3] sm:$0xff] %v764
        %768 = vst [vmem:[#allocation3 + $0x8] sm:$0xff] %v765
        %769 = vst [vmem:[#allocation3 + $0x10] sm:$0xff] %v766
        %v770 = vld [vmem:[#allocation3] sm:$0xff]
        %v771 = vld [vmem:[#allocation3 + $0x8] sm:$0xff]
        %v772 = vld [vmem:[#allocation3 + $0x10] sm:$0xff]
        %v773 = vld [vmem:[#allocation2 + $0x100] sm:$0xff]
        %v774 = vld [vmem:[#allocation2 + $0x108] sm:$0xff]
        %v775 = vld [vmem:[#allocation2 + $0x110] sm:$0xff]
        %v776 = vld [vmem:[#allocation2 + $0x118] sm:$0xff]
        %781 = vrot.lane.b32.xlu0 %v773, 90
        %v782 = vpop.permute.xlu0 %781
        %783 = vrot.lane.b32.xlu0 %v774, 90
        %v784 = vpop.permute.xlu0 %783
        %785 = vrot.lane.b32.xlu0 %v775, 90
        %v786 = vpop.permute.xlu0 %785
        %787 = vrot.lane.b32.xlu0 %v776, 90
        %v788 = vpop.permute.xlu0 %787
        %vm789 = vcmask 736256
        %v790 = vsel %vm789, %v782, %v784
        %v791 = vsel %vm789, %v784, %v786
        %v792 = vsel %vm789, %v786, %v788
        %v796 = vadd.f32 %v770, %v790
        %v797 = vadd.f32 %v771, %v791
        %v798 = vadd.f32 %v772, %v792
        %799 = vst [vmem:[#allocation3] sm:$0xff] %v796
        %800 = vst [vmem:[#allocation3 + $0x8] sm:$0xff] %v797
        %801 = vst [vmem:[#allocation3 + $0x10] sm:$0xff] %v798
        // Predicated region
        $region37: #{tpu_custom_call.1} parent=31 // pred_check
          %p802 = pneg %p212
        $region38: #{tpu_custom_call.1} parent=31 // pred_check_branch
          %804 = sbr.rel (%p802) target = $region40
        $region39: #{tpu_custom_call.1} parent=31 // pred_region
          %v805 = vld [vmem:[#allocation3] sm:$0xff]
          %v806 = vld [vmem:[#allocation3 + $0x8] sm:$0xff]
          %v807 = vld [vmem:[#allocation3 + $0x10] sm:$0xff]
          %v808 = vld [vmem:[%s2] sm:$0xff]
          %810 = vset.pattern.permute.xlu0 0
          %811 = vperm.xlu0 %810, %v808
          %v812 = vpop.permute.xlu0 %811
          %v814 = vadd.f32 %v805, %v812
          %v815 = vadd.f32 %v806, %v812
          %v816 = vadd.f32 %v807, %v812
          %817 = vst [vmem:[%s198] sm:$0xff] %v814
          %818 = vst [vmem:[%s198 + $0x8] sm:$0xff] %v815
          %819 = vst [vmem:[%s198 + $0x10] sm:$0xff] %v816
        $region40: #{tpu_custom_call.1} parent=31 // pred_fallthru
          _
        %s820 = sand.u32 %s112, 1
        %s821 = scalar_lea.sflag [#allocation5], %s820
        %s822 = sand.u32 %s112, 1
        %s823 = smul.addr %s822, 24
        %s824 = scalar_lea.vmem [#allocation4], %s823
        // Predicated region
        $region41: #{tpu_custom_call.1} parent=31 // pred_check
          %p825 = pneg %p122
        $region42: #{tpu_custom_call.1} parent=31 // pred_check_branch
          %827 = sbr.rel (%p825) target = $region44
        $region43: #{tpu_custom_call.1} parent=31 // pred_region
          %s829 = ssub.s32 384, 384
          %830 = vsyncadd %s821, %s829
          %s831 = smul.addr %s21, 3
          %s832 = smul.addr %s831, 128
          %s833 = scalar_lea.hbm %s3, %s832
          %s835 = sshll.u32 %s824, 4
          %s836 = int_to_ptr.vmem [resolvable:$true] %s835
          %838 = dma.vmem_to_hbm [thread:$0]  %s836, 384, %s833, %s821
        $region44: #{tpu_custom_call.1} parent=31 // pred_fallthru
          _
      $region32: #{tpu_custom_call.1} parent=5 // pred_fallthru
        _
      %p839 = scmp.le.s32.totalorder 2, %s12
      // Predicated region
      $region45: #{tpu_custom_call.1} parent=5 // pred_check
        %p840 = pneg %p839
      $region46: #{tpu_custom_call.1} parent=5 // pred_check_branch
        %842 = sbr.rel (%p840) target = $region48
      $region47: #{tpu_custom_call.1} parent=5 // pred_region
        %s843 = ssub.s32 %s12, 2
        // Predicated region
        $region49: #{tpu_custom_call.1} parent=47 // pred_check
          %p844 = pneg %p128
        $region50: #{tpu_custom_call.1} parent=47 // pred_check_branch
          %846 = sbr.rel (%p844) target = $region52
        $region51: #{tpu_custom_call.1} parent=47 // pred_region
          %s847 = sand.u32 %s113, 1
          %s848 = scalar_lea.sflag [#allocation5], %s847
          %s849 = sand.u32 %s113, 1
          %s850 = smul.addr %s849, 24
          %s851 = scalar_lea.vmem [#allocation4], %s850
          %852 = dma.done %s848, 384
        $region52: #{tpu_custom_call.1} parent=47 // pred_fallthru
          _
      $region48: #{tpu_custom_call.1} parent=5 // pred_fallthru
        _
    $region6: #{tpu_custom_call.1} parent=1 // loop_footer
      %s16 = sadd.s32 1, %s12
    $region7: #{tpu_custom_call.1} parent=1 // loop_footer_branch
      %11 = sbr.rel target = $region3
    $region8: #{tpu_custom_call.1} parent=1 // loop_exit
      _
    %853 = vsyncpa [#allocation5], 1
    %s854 = scalar_lea.sflag [#allocation5], 1
    %855 = vsyncpa %s854, 1

</llo_original>
